<compile_context>
chip_gen: v6e
topology: v6e:2x2x1
jax: 0.10.0
libtpu: 0.0.40
codegen_flags: <defaults>
</compile_context>

<pallas_src>
import functools

import jax
import jax.numpy as jnp
from jax.experimental import pallas as pl
from jax.experimental.pallas import tpu as pltpu

NEG_SLOPE = 0.2
MASK_VAL = -1e30
_HIGH = jax.lax.Precision.HIGHEST


def _round_up(x, m):
    return ((x + m - 1) // m) * m


def _gat_fused_kernel(src_w_ref, dst_w_ref, src_wrow_ref, prm_ref, adjt_ref,
                      out_ref, *, num_heads, f_per_head):
    """One destination-node tile; all heads fused.

    src_w_ref   : [Ns, 1]   node scalar weights, all source nodes (column)
    dst_w_ref   : [Tv, 1]   node scalar weights, this destination tile
    src_wrow_ref: [1, Ns]   node scalar weights, lane-major (avoids in-kernel transpose)
    prm_ref     : [8, HFp]  packed parameter slab:
                    row0 feat_scale, row1 feat_bias, row2 GAT bias (first HF lanes)
                    row3 el_scale, row4 el_bias, row5 er_scale, row6 er_bias (first H lanes)
    adjt_ref    : [Tv, Ns]  bf16 dst-major adjacency (adjt[v,u]=1 iff edge u->v)
    out_ref     : [Tv, HF]
    """
    src_col = src_w_ref[...]                                    # [Ns, 1]
    dst_col = dst_w_ref[...]                                    # [Tv, 1]
    src_row = src_wrow_ref[...]                                 # [1, Ns]

    # Rank-1 projection: feat[u, :] = node_w[u] * feat_scale + feat_bias   (pure VPU FMA)
    feat = src_col * prm_ref[0:1, :] + prm_ref[1:2, :]          # [Ns, HFp]

    mask = adjt_ref[...] > 0                                    # [Tv, Ns] bool

    for h in range(num_heads):                                  # static unroll (H is tiny)
        cl = prm_ref[3:4, h:h + 1]                              # [1, 1] scalars per head
        dl = prm_ref[4:5, h:h + 1]
        cr = prm_ref[5:6, h:h + 1]
        dr = prm_ref[6:7, h:h + 1]

        el_row = src_row * cl + dl                              # [1, Ns] source logits
        er_col = dst_col * cr + dr                              # [Tv, 1] dest logits

        e = er_col + el_row                                     # [Tv, Ns] dst-major logits
        e = jnp.where(e > 0, e, NEG_SLOPE * e)                  # leaky relu
        e = jnp.where(mask, e, MASK_VAL)                        # mask non-edges

        # edge softmax over incoming edges (lane reduction); exp of masked entries is exactly 0,
        # self-loops (added by the module) guarantee denom >= 1.
        m = jnp.max(e, axis=-1, keepdims=True)                  # [Tv, 1]
        p = jnp.exp(e - m)                                      # [Tv, Ns] unnormalized
        denom = jnp.sum(p, axis=-1, keepdims=True)              # [Tv, 1]

        # aggregate first, normalize the small [Tv,F] result (EUP reciprocal, not a [Tv,Ns] div)
        f0 = h * f_per_head
        agg = jnp.dot(p, feat[:, f0:f0 + f_per_head],
                      preferred_element_type=jnp.float32)       # [Tv, F]  (MXU)
        out_ref[:, f0:f0 + f_per_head] = (
            agg * pl.reciprocal(denom) + prm_ref[2:3, f0:f0 + f_per_head])


def gat_model_forward(node_w, w_lin, b_lin, wfc_k, attn_l, attn_r, adj, bias,
                      *, dst_tile=256):
    """node_w: [N,1]  w_lin/b_lin: [1,Din]  wfc_k: [H,Din,F]
       attn_l/attn_r/bias: [H,1,F]  adj: [N,N] (adj[u,v]=1 iff u->v)  ->  [N, H*F]"""
    N = node_w.shape[0]
    H, Din, F = wfc_k.shape
    HF = H * F
    HFp = _round_up(HF, 128)                                    # lane-dense parameter slab

    # ---- weight folding (tiny, constant-foldable). feats_in = node_w*w_lin + b_lin is rank-1,
    #      so every projection collapses to scale/bias rows. ----
    wfc_all = jnp.transpose(wfc_k, (1, 0, 2)).reshape(Din, HF)  # [Din, HF] (flatten(1) layout)
    feat_scale = jnp.matmul(w_lin, wfc_all, precision=_HIGH)[0]  # [HF]
    feat_bias = jnp.matmul(b_lin, wfc_all, precision=_HIGH)[0]   # [HF]
    wl_fold = jnp.einsum('hdf,hf->dh', wfc_k, attn_l[:, 0, :], precision=_HIGH)  # [Din, H]
    wr_fold = jnp.einsum('hdf,hf->dh', wfc_k, attn_r[:, 0, :], precision=_HIGH)
    el_sc = jnp.matmul(w_lin, wl_fold, precision=_HIGH)[0]       # [H]
    el_bs = jnp.matmul(b_lin, wl_fold, precision=_HIGH)[0]
    er_sc = jnp.matmul(w_lin, wr_fold, precision=_HIGH)[0]
    er_bs = jnp.matmul(b_lin, wr_fold, precision=_HIGH)[0]
    bias_flat = bias[:, 0, :].reshape(HF)

    params = jnp.zeros((8, HFp), jnp.float32)
    params = params.at[0, :HF].set(feat_scale.astype(jnp.float32))
    params = params.at[1, :HF].set(feat_bias.astype(jnp.float32))
    params = params.at[2, :HF].set(bias_flat.astype(jnp.float32))
    params = params.at[3, :H].set(el_sc.astype(jnp.float32))
    params = params.at[4, :H].set(el_bs.astype(jnp.float32))
    params = params.at[5, :H].set(er_sc.astype(jnp.float32))
    params = params.at[6, :H].set(er_bs.astype(jnp.float32))

    # ---- destination-node tiling (grid axis, "parallel" -> 2nd TC on v7x, bounded VMEM). ----
    N_pad = _round_up(N, 8)
    if N_pad <= dst_tile:
        tile_v = N_pad
    else:
        tile_v = dst_tile                                        # multiple of 16 (bf16 sublanes)
        N_pad = _round_up(N, tile_v)
    num_tiles = N_pad // tile_v

    node_col = jnp.zeros((N_pad, 1), jnp.float32).at[:N].set(node_w.astype(jnp.float32))
    node_row = node_col.reshape(1, N_pad)                        # lane-major copy (wrapper-side
    #                                                              layout plumbing, no kernel XLU)
    adj_t = jnp.zeros((N_pad, N_pad), jnp.bfloat16).at[:N, :N].set(
        jnp.transpose(adj).astype(jnp.bfloat16))                 # adj_t[v,u]=1 iff edge u->v

    kernel = functools.partial(_gat_fused_kernel, num_heads=H, f_per_head=F)

    out_pad = pl.pallas_call(
        kernel,
        out_shape=jax.ShapeDtypeStruct((N_pad, HF), jnp.float32),
        grid=(num_tiles,),
        in_specs=[
            pl.BlockSpec((N_pad, 1), lambda v: (0, 0)),          # all source node weights (col)
            pl.BlockSpec((tile_v, 1), lambda v: (v, 0)),         # dst-tile node weights (col)
            pl.BlockSpec((1, N_pad), lambda v: (0, 0)),          # source node weights (row)
            pl.BlockSpec((8, HFp), lambda v: (0, 0)),            # packed parameter slab
            pl.BlockSpec((tile_v, N_pad), lambda v: (v, 0)),     # dst-major adjacency tile (bf16)
        ],
        out_specs=pl.BlockSpec((tile_v, HF), lambda v: (v, 0)),
        compiler_params=pltpu.CompilerParams(
            dimension_semantics=("parallel",),
            vmem_limit_bytes=64 * 1024 * 1024),
    )(node_col, node_col, node_row, params, adj_t)

    return out_pad[:N]                                           # [N, H*F], flatten(1) layout


def gat_model_reference(node_w, w_lin, b_lin, wfc_k, attn_l, attn_r, adj, bias):
    """Pure-JAX reference of the same forward pass (faithful to the DGL math)."""
    feats_in = node_w * w_lin + b_lin                            # [N, Din]
    feat = jnp.einsum('nd,hdf->nhf', feats_in, wfc_k, precision=_HIGH)   # [N, H, F]
    al = attn_l[:, 0, :]                                         # [H, F]
    ar = attn_r[:, 0, :]
    el = jnp.sum(feat * al[None], -1)                            # [N, H]
    er = jnp.sum(feat * ar[None], -1)
    e = el[:, None, :] + er[None, :, :]                          # [N_src, N_dst, H]
    e = jnp.where(e > 0, e, NEG_SLOPE * e)
    mask = adj[:, :, None]
    e = jnp.where(mask > 0, e, MASK_VAL)
    m = jnp.max(e, axis=0, keepdims=True)
    p = jnp.exp(e - m) * mask
    a = p / jnp.sum(p, axis=0, keepdims=True)                    # [N_src, N_dst, H]
    out = jnp.einsum('uvh,uhf->vhf', a, feat, precision=_HIGH) + bias[None, :, 0, :]
    return out.reshape(out.shape[0], -1)


if __name__ == "__main__":
    N = 8          # number of graph nodes
    Din = 16       # in_feats
    F = 32         # out_feats
    H = 2          # num_heads

    key = jax.random.PRNGKey(0)
    k1, k2, k3, k4, k5, k6, k7, k8 = jax.random.split(key, 8)

    # node scalar weights (graph.ndata['weight'])
    node_w = jax.random.normal(k1, (N, 1), dtype=jnp.float32)

    # nn.Linear(1, in_feats): weight [Din, 1], bias [Din]  (stored here as rows)
    w_lin = 0.5 * jax.random.normal(k2, (1, Din), dtype=jnp.float32)
    b_lin = 0.1 * jax.random.normal(k3, (1, Din), dtype=jnp.float32)

    # GATConv fc: weight [H*F, Din], stored per-head transposed as [H, Din, F]
    wfc_k = (jax.random.normal(k4, (H, Din, F), dtype=jnp.float32)
             * jnp.sqrt(2.0 / (Din + F)))
    attn_l = 0.3 * jax.random.normal(k5, (H, 1, F), dtype=jnp.float32)
    attn_r = 0.3 * jax.random.normal(k6, (H, 1, F), dtype=jnp.float32)
    # GATConv bias (zeros in reset_parameters; nonzero here to exercise the add path)
    bias = 0.05 * jax.random.normal(k7, (H, 1, F), dtype=jnp.float32)

    # deterministic random directed graph + self loops (dgl.add_self_loop)
    adj = (jax.random.uniform(k8, (N, N)) < 0.35).astype(jnp.float32)
    adj = jnp.maximum(adj, jnp.eye(N, dtype=jnp.float32))        # adj[u, v]: edge u -> v

    out = gat_model_forward(node_w, w_lin, b_lin, wfc_k, attn_l, attn_r, adj, bias)
    out = jax.block_until_ready(out)

    ref = gat_model_reference(node_w, w_lin, b_lin, wfc_k, attn_l, attn_r, adj, bias)
    assert out.shape == (N, H * F), out.shape
    assert jnp.allclose(out, ref, rtol=1e-4, atol=1e-4), "mismatch vs JAX reference"

    print("KERNEL_OK")
</pallas_src>

<mosaic_0001>
module attributes {stable_mosaic.version = 11 : i64} {
  func.func @_gat_fused_kernel(%arg0: i32, %arg1: memref<8x1xf32, #tpu.memory_space<vmem>>, %arg2: memref<8x1xf32, #tpu.memory_space<vmem>>, %arg3: memref<1x8xf32, #tpu.memory_space<vmem>>, %arg4: memref<8x128xf32, #tpu.memory_space<vmem>>, %arg5: memref<8x8xbf16, #tpu.memory_space<vmem>>, %arg6: memref<8x64xf32, #tpu.memory_space<vmem>>) attributes {dimension_semantics = [#tpu.dimension_semantics<parallel>], iteration_bounds = array<i64: 1>, scalar_prefetch = 0 : i64, scratch_operands = 0 : i64, tpu.core_type = #tpu.core_type<tc>, window_params = [{pipeline_mode = #tpu.pipeline_mode<synchronous>, transform_indices = @transform_0, window_bounds = array<i64: 8, 1>}, {transform_indices = @transform_1, window_bounds = array<i64: 8, 1>}, {pipeline_mode = #tpu.pipeline_mode<synchronous>, transform_indices = @transform_2, window_bounds = array<i64: 1, 8>}, {pipeline_mode = #tpu.pipeline_mode<synchronous>, transform_indices = @transform_3, window_bounds = array<i64: 8, 128>}, {transform_indices = @transform_4, window_bounds = array<i64: 8, 8>}, {transform_indices = @transform_5, window_bounds = array<i64: 8, 64>}]} {
    %c0 = arith.constant 0 : index
    %c0_0 = arith.constant 0 : index
    %0 = vector.load %arg1[%c0, %c0_0] : memref<8x1xf32, #tpu.memory_space<vmem>>, vector<8x1xf32>
    %c0_1 = arith.constant 0 : index
    %c0_2 = arith.constant 0 : index
    %1 = vector.load %arg2[%c0_1, %c0_2] : memref<8x1xf32, #tpu.memory_space<vmem>>, vector<8x1xf32>
    %c0_3 = arith.constant 0 : index
    %c0_4 = arith.constant 0 : index
    %2 = vector.load %arg3[%c0_3, %c0_4] : memref<1x8xf32, #tpu.memory_space<vmem>>, vector<1x8xf32>
    %c0_5 = arith.constant 0 : index
    %c0_6 = arith.constant 0 : index
    %3 = vector.load %arg4[%c0_5, %c0_6] : memref<8x128xf32, #tpu.memory_space<vmem>>, vector<1x128xf32>
    %4 = vector.broadcast %0 : vector<8x1xf32> to vector<8x128xf32>
    %5 = vector.broadcast %3 : vector<1x128xf32> to vector<8x128xf32>
    %6 = arith.mulf %4, %5 : vector<8x128xf32>
    %c1 = arith.constant 1 : index
    %c0_7 = arith.constant 0 : index
    %7 = vector.load %arg4[%c1, %c0_7] : memref<8x128xf32, #tpu.memory_space<vmem>>, vector<1x128xf32>
    %8 = vector.broadcast %7 : vector<1x128xf32> to vector<8x128xf32>
    %9 = arith.addf %6, %8 : vector<8x128xf32>
    %c0_8 = arith.constant 0 : index
    %c0_9 = arith.constant 0 : index
    %10 = vector.load %arg5[%c0_8, %c0_9] : memref<8x8xbf16, #tpu.memory_space<vmem>>, vector<8x8xbf16>
    %cst = arith.constant 0.000000e+00 : bf16
    %11 = vector.broadcast %cst : bf16 to vector<8x8xbf16>
    %12 = arith.cmpf ogt, %10, %11 : vector<8x8xbf16>
    %c3 = arith.constant 3 : index
    %c0_10 = arith.constant 0 : index
    %13 = vector.load %arg4[%c3, %c0_10] : memref<8x128xf32, #tpu.memory_space<vmem>>, vector<1x1xf32>
    %c4 = arith.constant 4 : index
    %c0_11 = arith.constant 0 : index
    %14 = vector.load %arg4[%c4, %c0_11] : memref<8x128xf32, #tpu.memory_space<vmem>>, vector<1x1xf32>
    %c5 = arith.constant 5 : index
    %c0_12 = arith.constant 0 : index
    %15 = vector.load %arg4[%c5, %c0_12] : memref<8x128xf32, #tpu.memory_space<vmem>>, vector<1x1xf32>
    %c6 = arith.constant 6 : index
    %c0_13 = arith.constant 0 : index
    %16 = vector.load %arg4[%c6, %c0_13] : memref<8x128xf32, #tpu.memory_space<vmem>>, vector<1x1xf32>
    %17 = vector.broadcast %13 : vector<1x1xf32> to vector<1x8xf32>
    %18 = arith.mulf %2, %17 : vector<1x8xf32>
    %19 = vector.broadcast %14 : vector<1x1xf32> to vector<1x8xf32>
    %20 = arith.addf %18, %19 : vector<1x8xf32>
    %21 = vector.broadcast %15 : vector<1x1xf32> to vector<8x1xf32>
    %22 = arith.mulf %1, %21 : vector<8x1xf32>
    %23 = vector.broadcast %16 : vector<1x1xf32> to vector<8x1xf32>
    %24 = arith.addf %22, %23 : vector<8x1xf32>
    %25 = vector.broadcast %24 : vector<8x1xf32> to vector<8x8xf32>
    %26 = vector.broadcast %20 : vector<1x8xf32> to vector<8x8xf32>
    %27 = arith.addf %25, %26 : vector<8x8xf32>
    %cst_14 = arith.constant 0.000000e+00 : f32
    %28 = vector.broadcast %cst_14 : f32 to vector<8x8xf32>
    %29 = arith.cmpf ogt, %27, %28 : vector<8x8xf32>
    %cst_15 = arith.constant 2.000000e-01 : f32
    %30 = vector.broadcast %cst_15 : f32 to vector<8x8xf32>
    %31 = arith.mulf %30, %27 : vector<8x8xf32>
    %32 = arith.select %29, %27, %31 : vector<8x8xi1>, vector<8x8xf32>
    %cst_16 = arith.constant -1.000000e+30 : f32
    %33 = vector.broadcast %cst_16 : f32 to vector<8x8xf32>
    %34 = arith.select %12, %32, %33 : vector<8x8xi1>, vector<8x8xf32>
    %cst_17 = arith.constant dense<0xFF800000> : vector<8xf32>
    %35 = vector.multi_reduction <maximumf>, %34, %cst_17 [1] : vector<8x8xf32> to vector<8xf32>
    %36 = vector.shape_cast %35 : vector<8xf32> to vector<8x1xf32>
    %37 = vector.broadcast %36 : vector<8x1xf32> to vector<8x8xf32>
    %38 = arith.subf %34, %37 : vector<8x8xf32>
    %39 = math.exp %38 : vector<8x8xf32>
    %cst_18 = arith.constant dense<0.000000e+00> : vector<8xf32>
    %40 = vector.multi_reduction <add>, %39, %cst_18 [1] : vector<8x8xf32> to vector<8xf32>
    %41 = vector.shape_cast %40 : vector<8xf32> to vector<8x1xf32>
    %42 = vector.extract_strided_slice %9 {offsets = [0, 0], sizes = [8, 32], strides = [1, 1]} : vector<8x128xf32> to vector<8x32xf32>
    %cst_19 = arith.constant dense<0.000000e+00> : vector<8x32xf32>
    %43 = tpu.matmul %39, %42, %cst_19 {dimension_numbers = #tpu.dot_dimension_numbers<[1], [0], [0], [1], [0, 0, 1, 1], [], []>} : vector<8x8xf32>, vector<8x32xf32>, vector<8x32xf32> -> vector<8x32xf32>
    %44 = tpu.reciprocal %41 : vector<8x1xf32> -> vector<8x1xf32>
    %45 = vector.broadcast %44 : vector<8x1xf32> to vector<8x32xf32>
    %46 = arith.mulf %43, %45 : vector<8x32xf32>
    %c2 = arith.constant 2 : index
    %c0_20 = arith.constant 0 : index
    %47 = vector.load %arg4[%c2, %c0_20] : memref<8x128xf32, #tpu.memory_space<vmem>>, vector<1x32xf32>
    %48 = vector.broadcast %47 : vector<1x32xf32> to vector<8x32xf32>
    %49 = arith.addf %46, %48 : vector<8x32xf32>
    %c0_21 = arith.constant 0 : index
    %c0_22 = arith.constant 0 : index
    %50 = vector.load %arg6[%c0_21, %c0_22] : memref<8x64xf32, #tpu.memory_space<vmem>>, vector<8x32xf32>
    tpu.vector_store %arg6[%c0_21, %c0_22], %49 {strides = array<i32>} : memref<8x64xf32, #tpu.memory_space<vmem>>, vector<8x32xf32>,
    %c3_23 = arith.constant 3 : index
    %c1_24 = arith.constant 1 : index
    %51 = vector.load %arg4[%c3_23, %c1_24] : memref<8x128xf32, #tpu.memory_space<vmem>>, vector<1x1xf32>
    %c4_25 = arith.constant 4 : index
    %c1_26 = arith.constant 1 : index
    %52 = vector.load %arg4[%c4_25, %c1_26] : memref<8x128xf32, #tpu.memory_space<vmem>>, vector<1x1xf32>
    %c5_27 = arith.constant 5 : index
    %c1_28 = arith.constant 1 : index
    %53 = vector.load %arg4[%c5_27, %c1_28] : memref<8x128xf32, #tpu.memory_space<vmem>>, vector<1x1xf32>
    %c6_29 = arith.constant 6 : index
    %c1_30 = arith.constant 1 : index
    %54 = vector.load %arg4[%c6_29, %c1_30] : memref<8x128xf32, #tpu.memory_space<vmem>>, vector<1x1xf32>
    %55 = vector.broadcast %51 : vector<1x1xf32> to vector<1x8xf32>
    %56 = arith.mulf %2, %55 : vector<1x8xf32>
    %57 = vector.broadcast %52 : vector<1x1xf32> to vector<1x8xf32>
    %58 = arith.addf %56, %57 : vector<1x8xf32>
    %59 = vector.broadcast %53 : vector<1x1xf32> to vector<8x1xf32>
    %60 = arith.mulf %1, %59 : vector<8x1xf32>
    %61 = vector.broadcast %54 : vector<1x1xf32> to vector<8x1xf32>
    %62 = arith.addf %60, %61 : vector<8x1xf32>
    %63 = vector.broadcast %62 : vector<8x1xf32> to vector<8x8xf32>
    %64 = vector.broadcast %58 : vector<1x8xf32> to vector<8x8xf32>
    %65 = arith.addf %63, %64 : vector<8x8xf32>
    %cst_31 = arith.constant 0.000000e+00 : f32
    %66 = vector.broadcast %cst_31 : f32 to vector<8x8xf32>
    %67 = arith.cmpf ogt, %65, %66 : vector<8x8xf32>
    %cst_32 = arith.constant 2.000000e-01 : f32
    %68 = vector.broadcast %cst_32 : f32 to vector<8x8xf32>
    %69 = arith.mulf %68, %65 : vector<8x8xf32>
    %70 = arith.select %67, %65, %69 : vector<8x8xi1>, vector<8x8xf32>
    %cst_33 = arith.constant -1.000000e+30 : f32
    %71 = vector.broadcast %cst_33 : f32 to vector<8x8xf32>
    %72 = arith.select %12, %70, %71 : vector<8x8xi1>, vector<8x8xf32>
    %cst_34 = arith.constant dense<0xFF800000> : vector<8xf32>
    %73 = vector.multi_reduction <maximumf>, %72, %cst_34 [1] : vector<8x8xf32> to vector<8xf32>
    %74 = vector.shape_cast %73 : vector<8xf32> to vector<8x1xf32>
    %75 = vector.broadcast %74 : vector<8x1xf32> to vector<8x8xf32>
    %76 = arith.subf %72, %75 : vector<8x8xf32>
    %77 = math.exp %76 : vector<8x8xf32>
    %cst_35 = arith.constant dense<0.000000e+00> : vector<8xf32>
    %78 = vector.multi_reduction <add>, %77, %cst_35 [1] : vector<8x8xf32> to vector<8xf32>
    %79 = vector.shape_cast %78 : vector<8xf32> to vector<8x1xf32>
    %80 = vector.extract_strided_slice %9 {offsets = [0, 32], sizes = [8, 32], strides = [1, 1]} : vector<8x128xf32> to vector<8x32xf32>
    %cst_36 = arith.constant dense<0.000000e+00> : vector<8x32xf32>
    %81 = tpu.matmul %77, %80, %cst_36 {dimension_numbers = #tpu.dot_dimension_numbers<[1], [0], [0], [1], [0, 0, 1, 1], [], []>} : vector<8x8xf32>, vector<8x32xf32>, vector<8x32xf32> -> vector<8x32xf32>
    %82 = tpu.reciprocal %79 : vector<8x1xf32> -> vector<8x1xf32>
    %83 = vector.broadcast %82 : vector<8x1xf32> to vector<8x32xf32>
    %84 = arith.mulf %81, %83 : vector<8x32xf32>
    %c2_37 = arith.constant 2 : index
    %c32 = arith.constant 32 : index
    %85 = vector.load %arg4[%c2_37, %c32] : memref<8x128xf32, #tpu.memory_space<vmem>>, vector<1x32xf32>
    %86 = vector.broadcast %85 : vector<1x32xf32> to vector<8x32xf32>
    %87 = arith.addf %84, %86 : vector<8x32xf32>
    %c0_38 = arith.constant 0 : index
    %c32_39 = arith.constant 32 : index
    %88 = vector.load %arg6[%c0_38, %c32_39] : memref<8x64xf32, #tpu.memory_space<vmem>>, vector<8x32xf32>
    tpu.vector_store %arg6[%c0_38, %c32_39], %87 {strides = array<i32>} : memref<8x64xf32, #tpu.memory_space<vmem>>, vector<8x32xf32>,
    return
  }
  func.func @transform_0(%arg0: i32) -> (i32, i32) {
    %c0_i32 = arith.constant 0 : i32
    %c0_i32_0 = arith.constant 0 : i32
    %c0_i32_1 = arith.constant 0 : i32
    return %c0_i32, %c0_i32_0 : i32, i32
  }
  func.func @transform_1(%arg0: i32) -> (i32, i32) {
    %c0_i32 = arith.constant 0 : i32
    %c0_i32_0 = arith.constant 0 : i32
    return %arg0, %c0_i32 : i32, i32
  }
  func.func @transform_2(%arg0: i32) -> (i32, i32) {
    %c0_i32 = arith.constant 0 : i32
    %c0_i32_0 = arith.constant 0 : i32
    %c0_i32_1 = arith.constant 0 : i32
    return %c0_i32, %c0_i32_0 : i32, i32
  }
  func.func @transform_3(%arg0: i32) -> (i32, i32) {
    %c0_i32 = arith.constant 0 : i32
    %c0_i32_0 = arith.constant 0 : i32
    %c0_i32_1 = arith.constant 0 : i32
    return %c0_i32, %c0_i32_0 : i32, i32
  }
  func.func @transform_4(%arg0: i32) -> (i32, i32) {
    %c0_i32 = arith.constant 0 : i32
    %c0_i32_0 = arith.constant 0 : i32
    return %arg0, %c0_i32 : i32, i32
  }
  func.func @transform_5(%arg0: i32) -> (i32, i32) {
    %c0_i32 = arith.constant 0 : i32
    %c0_i32_0 = arith.constant 0 : i32
    return %arg0, %c0_i32 : i32, i32
  }
}

</mosaic_0001>

<llo_original>
// kernel: tpu_custom_call.1
$region0: #{tpu_custom_call.1}
  #allocation0 [shape = 'u32[]', space=smem, size = 0x4, offset = 0x4, fixed_abs, tag = 'smem constant byte address 0x4 - core index']
  #allocation1 [shape = 'u32[144,128]{1,0:T(1,128)}', space=vmem, size = 0x12000, scoped, tag = 'internal scratch']
  %s0 = inlined_call_operand.vmem [shape: f32[8,1], index: 0, kind: input, shape index: {}]
  %s1 = inlined_call_operand.vmem [shape: f32[8,1], index: 1, kind: input, shape index: {}]
  %s2 = inlined_call_operand.vmem [shape: f32[1,8], index: 2, kind: input, shape index: {}]
  %s3 = inlined_call_operand.vmem [shape: f32[8,128], index: 3, kind: input, shape index: {}]
  %s4 = inlined_call_operand.vmem [shape: bf16[8,8], index: 4, kind: input, shape index: {}]
  %s5 = inlined_call_operand.hbm [shape: f32[8,64], index: 5, kind: output, shape index: {}]
  %s6 = sld [smem:[#allocation0]]
  $region30: #{tpu_custom_call.1} parent=0
    _
  %s8 = ssub.s32 1, %s6
  %s9 = scalar_select 0, %s8, %s6
  $region1: #{tpu_custom_call.1} parent=0
    #allocation2 [shape = 'u8[4096]{0}', space=vmem, size = 0x1000, scoped, tag = 'output window, operand 0, single buffered']
    #allocation3 [shape = 's32[1]{0}', space=sflag, size = 0x4, scoped, tag = 'scoped memory for tpu_custom_call.1']
    %10 = vsyncpa [#allocation3], 0
    // Predicated region
    $region2: #{tpu_custom_call.1} parent=1 // pred_check
      _
    $region3: #{tpu_custom_call.1} parent=1 // pred_check_branch
      %12 = sbr.rel (0) target = $region5
    $region4: #{tpu_custom_call.1} parent=1 // pred_region
      _
    $region5: #{tpu_custom_call.1} parent=1 // pred_fallthru
      _
    // Predicated region
    $region6: #{tpu_custom_call.1} parent=1 // pred_check
      _
    $region7: #{tpu_custom_call.1} parent=1 // pred_check_branch
      %14 = sbr.rel (0) target = $region9
    $region8: #{tpu_custom_call.1} parent=1 // pred_region
      _
    $region9: #{tpu_custom_call.1} parent=1 // pred_fallthru
      _
    // Predicated region
    $region10: #{tpu_custom_call.1} parent=1 // pred_check
      _
    $region11: #{tpu_custom_call.1} parent=1 // pred_check_branch
      %16 = sbr.rel (0) target = $region13
    $region12: #{tpu_custom_call.1} parent=1 // pred_region
      _
    $region13: #{tpu_custom_call.1} parent=1 // pred_fallthru
      _
    // Predicated region
    $region14: #{tpu_custom_call.1} parent=1 // pred_check
      _
    $region15: #{tpu_custom_call.1} parent=1 // pred_check_branch
      %18 = sbr.rel (0) target = $region17
    $region16: #{tpu_custom_call.1} parent=1 // pred_region
      _
    $region17: #{tpu_custom_call.1} parent=1 // pred_fallthru
      _
    // Predicated region
    $region18: #{tpu_custom_call.1} parent=1 // pred_check
      _
    $region19: #{tpu_custom_call.1} parent=1 // pred_check_branch
      %20 = sbr.rel (0) target = $region21
    $region20: #{tpu_custom_call.1} parent=1 // pred_region
      _
    $region21: #{tpu_custom_call.1} parent=1 // pred_fallthru
      _
    %v24 = vld [vmem:[%s0] sm:$0xff]
    %v25 = vld [vmem:[%s1] sm:$0xff]
    %v26 = vld [vmem:[%s2] sm:$0x1]
    %v27 = vld [vmem:[%s3] sm:$0x1]
    %29 = vset.pattern.permute.xlu0 0
    %30 = vperm.xlu0 %29, %v24
    %v31 = vpop.permute.xlu0 %30
    %v33 = vlaneseq
    %v34 = vshrl.u32 %v33, 7
    %v35 = vsub.s32 0, %v34
    %v36 = vrot.slane %v27, %v35
    %v37 = vmul.f32 %v31, %v36
    %v38 = vld [vmem:[%s3 + $0x1] sm:$0x1]
    %v39 = vlaneseq
    %v40 = vshrl.u32 %v39, 7
    %v41 = vsub.s32 0, %v40
    %v42 = vrot.slane %v38, %v41
    %v43 = vadd.f32 %v37, %v42
    %v44 = vld [vmem:[%s4] sm:$0xf]
    %vm45 = vcmp.gt.bf16.partialorder %v44, 0
    %v46 = vld [vmem:[%s3 + $0x3] sm:$0x1]
    %v47 = vld [vmem:[%s3 + $0x4] sm:$0x1]
    %v48 = vld [vmem:[%s3 + $0x5] sm:$0x1]
    %v49 = vld [vmem:[%s3 + $0x6] sm:$0x1]
    %51 = vset.pattern.permute.xlu0 0
    %52 = vperm.xlu0 %51, %v46
    %v53 = vpop.permute.xlu0 %52
    %v55 = vmul.f32 %v26, %v53
    %57 = vset.pattern.permute.xlu0 0
    %58 = vperm.xlu0 %57, %v47
    %v59 = vpop.permute.xlu0 %58
    %v61 = vadd.f32 %v55, %v59
    %v62 = vlaneseq
    %v63 = vshrl.u32 %v62, 7
    %v64 = vsub.s32 0, %v63
    %v65 = vrot.slane %v48, %v64
    %v66 = vmul.f32 %v25, %v65
    %v67 = vlaneseq
    %v68 = vshrl.u32 %v67, 7
    %v69 = vsub.s32 0, %v68
    %v70 = vrot.slane %v49, %v69
    %v71 = vadd.f32 %v66, %v70
    %73 = vset.pattern.permute.xlu0 0
    %74 = vperm.xlu0 %73, %v71
    %v75 = vpop.permute.xlu0 %74
    %v78 = vlaneseq
    %v79 = vshrl.u32 %v78, 7
    %v80 = vsub.s32 0, %v79
    %v81 = vrot.slane %v61, %v80
    %v83 = vadd.f32 %v75, %v81
    %vm84 = vcmp.gt.f32.partialorder %v83, 0.0
    %v85 = vmul.f32 %v83, 0.2
    %v86 = vsel %vm84, %v83, %v85
    %v87 = vsel %vm45, 65537, 0
    %v88 = vunpack.c.l.b16 %v87
    %vm89 = vcmp.ne.s32.totalorder %v88, 0
    %v90 = vsel %vm89, %v86, -1e+30
    %vm91 = vcmask 64512
    %v92 = vsel %vm91, %v90, -inf
    %93 = vmax.xlane.f32.xlu0 %v92
    %v94 = vpop.xlane.xlu0 %93
    %v95 = vsub.f32 %v90, %v94
    %v96 = vmul.f32 %v95, 1.442695
    %v97 = vpow.pop %v96
    %v98 = vsel %vm91, %v97, 0.0
    %99 = vadd.xlane.f32.xlu0 %v98
    %v100 = vpop.xlane.xlu0 %99
    %v102 = vsel %vm91, %v97, 0
    %104 = vmatprep.subr.mxu0 0.0
    %105 = vmatpush1.msra.mxu0 0.0
    %106 = vmatprep.subr.mxu0 0.0
    %107 = vmatpush1.msra.mxu0 0.0
    %108 = vmatprep.subr.mxu0 0.0
    %109 = vmatpush1.msra.mxu0 0.0
    %110 = vmatprep.subr.mxu0 0.0
    %111 = vmatpush1.msra.mxu0 0.0
    %112 = vmatprep.subr.mxu0 0.0
    %113 = vmatpush1.msra.mxu0 0.0
    %114 = vmatprep.subr.mxu0 0.0
    %115 = vmatpush1.msra.mxu0 0.0
    %116 = vmatprep.subr.mxu0 0.0
    %117 = vmatpush1.msra.mxu0 0.0
    %118 = vmatprep.subr.mxu0 0.0
    %119 = vmatpush1.msra.mxu0 0.0
    %120 = vmatprep.subr.mxu0 0.0
    %121 = vmatpush1.msra.mxu0 0.0
    %122 = vmatprep.subr.mxu0 0.0
    %123 = vmatpush1.msra.mxu0 0.0
    %124 = vmatprep.subr.mxu0 0.0
    %125 = vmatpush1.msra.mxu0 0.0
    %126 = vmatprep.subr.mxu0 0.0
    %127 = vmatpush1.msra.mxu0 0.0
    %128 = vmatprep.subr.mxu0 0.0
    %129 = vmatpush1.msra.mxu0 0.0
    %130 = vmatprep.subr.mxu0 0.0
    %131 = vmatpush1.msra.mxu0 0.0
    %132 = vmatprep.subr.mxu0 0.0
    %133 = vmatpush1.msra.mxu0 0.0
    %134 = vmatprep.subr.mxu0 0.0
    %135 = vmatpush1.msra.mxu0 %v43
    %136 = vmatprep.subr.mxu0 0.0
    %137 = vmatpush2.msra.mxu0 0.0
    %138 = vmatprep.subr.mxu0 0.0
    %139 = vmatpush2.msra.mxu0 0.0
    %140 = vmatprep.subr.mxu0 0.0
    %141 = vmatpush2.msra.mxu0 0.0
    %142 = vmatprep.subr.mxu0 0.0
    %143 = vmatpush2.msra.mxu0 0.0
    %144 = vmatprep.subr.mxu0 0.0
    %145 = vmatpush2.msra.mxu0 0.0
    %146 = vmatprep.subr.mxu0 0.0
    %147 = vmatpush2.msra.mxu0 0.0
    %148 = vmatprep.subr.mxu0 0.0
    %149 = vmatpush2.msra.mxu0 0.0
    %150 = vmatprep.subr.mxu0 0.0
    %151 = vmatpush2.msra.mxu0 0.0
    %152 = vmatprep.subr.mxu0 0.0
    %153 = vmatpush2.msra.mxu0 0.0
    %154 = vmatprep.subr.mxu0 0.0
    %155 = vmatpush2.msra.mxu0 0.0
    %156 = vmatprep.subr.mxu0 0.0
    %157 = vmatpush2.msra.mxu0 0.0
    %158 = vmatprep.subr.mxu0 0.0
    %159 = vmatpush2.msra.mxu0 0.0
    %160 = vmatprep.subr.mxu0 0.0
    %161 = vmatpush2.msra.mxu0 0.0
    %162 = vmatprep.subr.mxu0 0.0
    %163 = vmatpush2.msra.mxu0 0.0
    %164 = vmatprep.subr.mxu0 0.0
    %165 = vmatpush2.msra.mxu0 0.0
    %166 = vmatprep.subr.mxu0 0.0
    %167 = vmatpush2.msra.mxu0 0.0
    %168 = vmatprep.mubr.f32.mxu0 0.0
    %169 = vmatmul.mubr.f32.gmra.mxu0 %v102
    %v170 = vpop.f32.mrf.mxu0
    %v171 = vadd.f32 0.0, %v170
    %v172 = vpop.f32.mrf.mxu0
    %173 = vdwg.mxu0
    %v174 = vrcp.pop %v100
    %v175 = vmul.f32 %v171, %v174
    %v176 = vld [vmem:[%s3 + $0x2] sm:$0x1]
    %v177 = vlaneseq
    %v178 = vshrl.u32 %v177, 7
    %v179 = vsub.s32 0, %v178
    %v180 = vrot.slane %v176, %v179
    %v181 = vadd.f32 %v175, %v180
    %vm182 = vcmask 261120
    %183 = vst.msk [vmem:[#allocation2] sm:$0xff] %vm182, %v181
    %v184 = vld [vmem:[%s3 + $0x3] sm:$0x1]
    %v185 = vld [vmem:[%s3 + $0x4] sm:$0x1]
    %v186 = vld [vmem:[%s3 + $0x5] sm:$0x1]
    %v187 = vld [vmem:[%s3 + $0x6] sm:$0x1]
    %189 = vset.pattern.permute.xlu0 1
    %190 = vperm.xlu0 %189, %v184
    %v191 = vpop.permute.xlu0 %190
    %v193 = vmul.f32 %v26, %v191
    %195 = vset.pattern.permute.xlu0 1
    %196 = vperm.xlu0 %195, %v185
    %v197 = vpop.permute.xlu0 %196
    %v199 = vadd.f32 %v193, %v197
    %v200 = vlaneseq
    %v201 = vshrl.u32 %v200, 7
    %v202 = vsub.s32 0, %v201
    %v203 = vrot.slane %v186, %v202
    %205 = vrot.lane.b32.xlu0 %v203, 127
    %v206 = vpop.permute.xlu0 %205
    %v208 = vmul.f32 %v25, %v206
    %v209 = vlaneseq
    %v210 = vshrl.u32 %v209, 7
    %v211 = vsub.s32 0, %v210
    %v212 = vrot.slane %v187, %v211
    %214 = vrot.lane.b32.xlu0 %v212, 127
    %v215 = vpop.permute.xlu0 %214
    %v217 = vadd.f32 %v208, %v215
    %219 = vset.pattern.permute.xlu0 0
    %220 = vperm.xlu0 %219, %v217
    %v221 = vpop.permute.xlu0 %220
    %v224 = vlaneseq
    %v225 = vshrl.u32 %v224, 7
    %v226 = vsub.s32 0, %v225
    %v227 = vrot.slane %v199, %v226
    %v229 = vadd.f32 %v221, %v227
    %vm230 = vcmp.gt.f32.partialorder %v229, 0.0
    %v231 = vmul.f32 %v229, 0.2
    %v232 = vsel %vm230, %v229, %v231
    %v233 = vsel %vm89, %v232, -1e+30
    %v234 = vsel %vm91, %v233, -inf
    %235 = vmax.xlane.f32.xlu0 %v234
    %v236 = vpop.xlane.xlu0 %235
    %v237 = vsub.f32 %v233, %v236
    %v238 = vmul.f32 %v237, 1.442695
    %v239 = vpow.pop %v238
    %v240 = vsel %vm91, %v239, 0.0
    %241 = vadd.xlane.f32.xlu0 %v240
    %v242 = vpop.xlane.xlu0 %241
    %244 = vrot.lane.b32.xlu0 %v43, 96
    %v245 = vpop.permute.xlu0 %244
    %v248 = vsel %vm91, %v239, 0
    %250 = vmatprep.subr.mxu0 0.0
    %251 = vmatpush1.msra.mxu0 0.0
    %252 = vmatprep.subr.mxu0 0.0
    %253 = vmatpush1.msra.mxu0 0.0
    %254 = vmatprep.subr.mxu0 0.0
    %255 = vmatpush1.msra.mxu0 0.0
    %256 = vmatprep.subr.mxu0 0.0
    %257 = vmatpush1.msra.mxu0 0.0
    %258 = vmatprep.subr.mxu0 0.0
    %259 = vmatpush1.msra.mxu0 0.0
    %260 = vmatprep.subr.mxu0 0.0
    %261 = vmatpush1.msra.mxu0 0.0
    %262 = vmatprep.subr.mxu0 0.0
    %263 = vmatpush1.msra.mxu0 0.0
    %264 = vmatprep.subr.mxu0 0.0
    %265 = vmatpush1.msra.mxu0 0.0
    %266 = vmatprep.subr.mxu0 0.0
    %267 = vmatpush1.msra.mxu0 0.0
    %268 = vmatprep.subr.mxu0 0.0
    %269 = vmatpush1.msra.mxu0 0.0
    %270 = vmatprep.subr.mxu0 0.0
    %271 = vmatpush1.msra.mxu0 0.0
    %272 = vmatprep.subr.mxu0 0.0
    %273 = vmatpush1.msra.mxu0 0.0
    %274 = vmatprep.subr.mxu0 0.0
    %275 = vmatpush1.msra.mxu0 0.0
    %276 = vmatprep.subr.mxu0 0.0
    %277 = vmatpush1.msra.mxu0 0.0
    %278 = vmatprep.subr.mxu0 0.0
    %279 = vmatpush1.msra.mxu0 0.0
    %280 = vmatprep.subr.mxu0 0.0
    %281 = vmatpush1.msra.mxu0 %v245
    %282 = vmatprep.subr.mxu0 0.0
    %283 = vmatpush2.msra.mxu0 0.0
    %284 = vmatprep.subr.mxu0 0.0
    %285 = vmatpush2.msra.mxu0 0.0
    %286 = vmatprep.subr.mxu0 0.0
    %287 = vmatpush2.msra.mxu0 0.0
    %288 = vmatprep.subr.mxu0 0.0
    %289 = vmatpush2.msra.mxu0 0.0
    %290 = vmatprep.subr.mxu0 0.0
    %291 = vmatpush2.msra.mxu0 0.0
    %292 = vmatprep.subr.mxu0 0.0
    %293 = vmatpush2.msra.mxu0 0.0
    %294 = vmatprep.subr.mxu0 0.0
    %295 = vmatpush2.msra.mxu0 0.0
    %296 = vmatprep.subr.mxu0 0.0
    %297 = vmatpush2.msra.mxu0 0.0
    %298 = vmatprep.subr.mxu0 0.0
    %299 = vmatpush2.msra.mxu0 0.0
    %300 = vmatprep.subr.mxu0 0.0
    %301 = vmatpush2.msra.mxu0 0.0
    %302 = vmatprep.subr.mxu0 0.0
    %303 = vmatpush2.msra.mxu0 0.0
    %304 = vmatprep.subr.mxu0 0.0
    %305 = vmatpush2.msra.mxu0 0.0
    %306 = vmatprep.subr.mxu0 0.0
    %307 = vmatpush2.msra.mxu0 0.0
    %308 = vmatprep.subr.mxu0 0.0
    %309 = vmatpush2.msra.mxu0 0.0
    %310 = vmatprep.subr.mxu0 0.0
    %311 = vmatpush2.msra.mxu0 0.0
    %312 = vmatprep.subr.mxu0 0.0
    %313 = vmatpush2.msra.mxu0 0.0
    %314 = vmatprep.mubr.f32.mxu0 0.0
    %315 = vmatmul.mubr.f32.gmra.mxu0 %v248
    %v316 = vpop.f32.mrf.mxu0
    %v317 = vadd.f32 0.0, %v316
    %v318 = vpop.f32.mrf.mxu0
    %319 = vdwg.mxu0
    %v320 = vrcp.pop %v242
    %v321 = vmul.f32 %v317, %v320
    %v322 = vld [vmem:[%s3 + $0x2] sm:$0x1]
    %v323 = vlaneseq
    %v324 = vshrl.u32 %v323, 7
    %v325 = vsub.s32 0, %v324
    %v326 = vrot.slane %v322, %v325
    %328 = vrot.lane.b32.xlu0 %v326, 96
    %v329 = vpop.permute.xlu0 %328
    %v331 = vadd.f32 %v321, %v329
    %333 = vrot.lane.b32.xlu0 %v331, 32
    %v334 = vpop.permute.xlu0 %333
    %vm336 = vcmask 523520
    %337 = vst.msk [vmem:[#allocation2] sm:$0xff] %vm336, %v334
    // Predicated region
    $region22: #{tpu_custom_call.1} parent=1 // pred_check
      _
    $region23: #{tpu_custom_call.1} parent=1 // pred_check_branch
      %339 = sbr.rel (0) target = $region25
    $region24: #{tpu_custom_call.1} parent=1 // pred_region
      %s341 = ssub.s32 128, 128
      %342 = vsyncadd [#allocation3], %s341
      %s344 = sshll.u32 [#allocation2], 4
      %s345 = int_to_ptr.vmem [resolvable:$true] %s344
      %347 = dma.vmem_to_hbm [thread:$0]  %s345, 128, %s5, [#allocation3]
    $region25: #{tpu_custom_call.1} parent=1 // pred_fallthru
      _
    // Predicated region
    $region26: #{tpu_custom_call.1} parent=1 // pred_check
      _
    $region27: #{tpu_custom_call.1} parent=1 // pred_check_branch
      %349 = sbr.rel (0) target = $region29
    $region28: #{tpu_custom_call.1} parent=1 // pred_region
      %350 = dma.done [#allocation3], 128
    $region29: #{tpu_custom_call.1} parent=1 // pred_fallthru
      _
    %351 = vsyncpa [#allocation3], 1

</llo_original>
